<compile_context>
chip_gen: v7x
topology: tpu7x:2x2x1
jax: 0.10.0
libtpu: 0.0.40
codegen_flags: <defaults>
</compile_context>

<pallas_src>
import jax
import jax.numpy as jnp
from jax.experimental import pallas as pl
from jax.experimental.pallas import tpu as pltpu


# ---------------------------------------------------------------------------
# Stage 1: u^T[i, b] = sum_j W[i, j] * context[b, j]
# Tiled over (i, j); j is the reduction axis -> f32 accumulator + pl.when.
# ---------------------------------------------------------------------------
def _project_kernel(context_ref, w_ref, ut_ref, acc_ref):
    j = pl.program_id(1)

    @pl.when(j == 0)
    def _init():
        acc_ref[...] = jnp.zeros_like(acc_ref)

    # W tile (tI, tJ) x context (B, tJ), contracting j with j -> (tI, B).
    acc_ref[...] += jax.lax.dot_general(
        w_ref[...], context_ref[...],
        dimension_numbers=(((1,), (1,)), ((), ())),
        preferred_element_type=jnp.float32)

    @pl.when(j == pl.num_programs(1) - 1)
    def _finalize():
        ut_ref[...] = acc_ref[...].astype(ut_ref.dtype)


def _project_context(context, weight):
    """u^T = W @ context^T, tiled so W never has to sit whole in VMEM."""
    B, H = context.shape

    # Contraction tile tJ must divide H exactly (a ragged tail would add
    # garbage into the accumulator); the output tile tI may be ragged.
    tJ = H
    for cand in (512, 256, 128):
        if H % cand == 0:
            tJ = cand
            break
    tI = H if H <= 512 else 512

    return pl.pallas_call(
        _project_kernel,
        out_shape=jax.ShapeDtypeStruct((H, B), jnp.float32),
        grid=(pl.cdiv(H, tI), H // tJ),
        in_specs=[
            pl.BlockSpec((B, tJ), lambda i, j: (0, j)),    # context slab
            pl.BlockSpec((tI, tJ), lambda i, j: (i, j)),   # W tile
        ],
        out_specs=pl.BlockSpec((tI, B), lambda i, j: (i, 0)),
        scratch_shapes=[pltpu.VMEM((tI, B), jnp.float32)],
        compiler_params=pltpu.CompilerParams(
            dimension_semantics=("parallel", "arbitrary")),
    )(context, weight)


# ---------------------------------------------------------------------------
# Stage 2: scores[t, b] = states[b, t, :] @ u^T[:, b] + bias
# Grid over T only; whole batch processed per tile.  HBM-bound on the states
# read; all blocks satisfy the (8,128) rule for any B.
# ---------------------------------------------------------------------------
def _score_kernel(ut_ref, states_ref, bias_ref, out_ref):
    # ut_ref: (H, B) resident; states_ref: (B, tT, H) streamed;
    # bias_ref: (1,) SMEM; out_ref: (tT, B).
    B = out_ref.shape[1]
    bias = bias_ref[0]
    for b in range(B):  # trace-time constant, unrolled; each step is a matvec
        s_b = states_ref[b]                                # (tT, H), natural layout
        u_b = ut_ref[:, pl.ds(b, 1)].astype(s_b.dtype)     # (H, 1)
        col = jnp.dot(s_b, u_b, preferred_element_type=jnp.float32)  # (tT, 1)
        out_ref[:, pl.ds(b, 1)] = (col + bias).astype(out_ref.dtype)


def general_score(states, context, weight, bias, *,
                  states_tile_budget_bytes=24 << 20):
    """states: (B, T, H), context: (B, H), weight: (H, H), bias: (1,).

    Returns (B, T, 1), matching nn.Bilinear(H, H, 1, bias=True).
    """
    B, T, H = states.shape
    itemsize = states.dtype.itemsize

    # Stage 1: fold W into the context once (keeps W out of the streaming loop).
    u_t = _project_context(context, weight)                # (H, B) f32

    # Stage 2 tiling: double-buffered states tile sized against a VMEM budget
    # that also fits v7x's 64 MiB per-TC VMEM.  No padding: ragged last block
    # only produces masked output rows (contraction is over H, not T).
    # TODO(synk): add a batch-tile grid axis if B*H is so large that even a
    # 128-row tile exceeds the budget.
    per_row = max(1, B * H * itemsize)
    tT = states_tile_budget_bytes // (2 * per_row)
    tT = max(128, min(2048, (tT // 128) * 128))
    if tT >= T:
        tT = T                                             # single whole-T block
    n_t = pl.cdiv(T, tT)

    vmem_limit = int(2 * B * tT * H * itemsize             # double-buffered states
                     + 2 * H * B * 4                       # resident u^T
                     + 2 * tT * B * 4                      # output tiles
                     + (4 << 20))                          # headroom
    vmem_limit = min(max(vmem_limit, 8 << 20), 48 << 20)

    scores_tb = pl.pallas_call(
        _score_kernel,
        out_shape=jax.ShapeDtypeStruct((T, B), jnp.float32),
        grid=(n_t,),
        in_specs=[
            pl.BlockSpec((H, B), lambda t: (0, 0)),             # u^T, resident
            pl.BlockSpec((B, tT, H), lambda t: (0, t, 0)),      # streamed states
            pl.BlockSpec(memory_space=pltpu.MemorySpace.SMEM),  # bias scalar
        ],
        out_specs=pl.BlockSpec((tT, B), lambda t: (t, 0)),
        compiler_params=pltpu.CompilerParams(
            dimension_semantics=("parallel",),
            vmem_limit_bytes=vmem_limit,
        ),
    )(u_t, states, bias)

    # (T, B) -> (B, T, 1); the transpose touches only the tiny score tensor
    # (1/H of the states traffic) and is handled by XLA.
    return jnp.transpose(scores_tb)[:, :, None]


def general_score_ref(states, context, weight, bias):
    """Pure-JAX reference matching torch.nn.Bilinear(H, H, 1) semantics."""
    tmp = jnp.einsum("bti,ij->btj", states, weight)
    scores = jnp.sum(tmp * context[:, None, :], axis=-1, keepdims=True)
    return scores + bias[0]


if __name__ == "__main__":
    B, T, H = 2, 8, 32

    key = jax.random.PRNGKey(0)
    k_s, k_c, k_w, k_b = jax.random.split(key, 4)

    states = jax.random.normal(k_s, (B, T, H), dtype=jnp.float32)
    context = jax.random.normal(k_c, (B, H), dtype=jnp.float32)

    # Deterministic init mimicking nn.Bilinear: U(-1/sqrt(H), 1/sqrt(H)).
    bound = 1.0 / (H ** 0.5)
    weight = jax.random.uniform(k_w, (H, H), jnp.float32, -bound, bound)
    bias = jax.random.uniform(k_b, (1,), jnp.float32, -bound, bound)

    out = general_score(states, context, weight, bias)
    out = jax.block_until_ready(out)
    expected = general_score_ref(states, context, weight, bias)
    assert out.shape == (B, T, 1), out.shape
    assert jnp.allclose(out, expected, atol=1e-4, rtol=1e-4), float(
        jnp.max(jnp.abs(out - expected)))

    # Ragged-T path (T not a multiple of the tile, no padding): forces
    # tT = 128 < T so the last block is partial and its tail rows are masked.
    T2 = 200
    states2 = jax.random.normal(k_s, (B, T2, H), dtype=jnp.float32)
    out2 = general_score(states2, context, weight, bias,
                         states_tile_budget_bytes=1)
    out2 = jax.block_until_ready(out2)
    expected2 = general_score_ref(states2, context, weight, bias)
    assert out2.shape == (B, T2, 1), out2.shape
    assert jnp.allclose(out2, expected2, atol=1e-4, rtol=1e-4), float(
        jnp.max(jnp.abs(out2 - expected2)))

    print("KERNEL_OK")
</pallas_src>

<mosaic_0001>
module attributes {stable_mosaic.version = 11 : i64} {
  func.func @_project_kernel(%arg0: i32, %arg1: i32, %arg2: memref<2x32xf32, #tpu.memory_space<vmem>>, %arg3: memref<32x32xf32, #tpu.memory_space<vmem>>, %arg4: memref<32x2xf32, #tpu.memory_space<vmem>>, %arg5: memref<32x2xf32, #tpu.memory_space<vmem>>) attributes {dimension_semantics = [#tpu.dimension_semantics<parallel>, #tpu.dimension_semantics<arbitrary>], iteration_bounds = array<i64: 1, 1>, scalar_prefetch = 0 : i64, scratch_operands = 1 : i64, tpu.core_type = #tpu.core_type<tc>, window_params = [{transform_indices = @transform_0, window_bounds = array<i64: 2, 32>}, {transform_indices = @transform_1, window_bounds = array<i64: 32, 32>}, {transform_indices = @transform_2, window_bounds = array<i64: 32, 2>}]} {
    %c0_i32 = arith.constant 0 : i32
    %0 = arith.cmpi eq, %arg1, %c0_i32 : i32
    %1 = arith.extui %0 : i1 to i32
    %c0_i32_0 = arith.constant 0 : i32
    %2 = arith.cmpi ne, %1, %c0_i32_0 : i32
    scf.if %2 {
      %cst_10 = arith.constant 0.000000e+00 : f32
      %12 = vector.broadcast %cst_10 : f32 to vector<32x2xf32>
      %c0_11 = arith.constant 0 : index
      %c0_12 = arith.constant 0 : index
      %13 = vector.load %arg5[%c0_11, %c0_12] : memref<32x2xf32, #tpu.memory_space<vmem>>, vector<32x2xf32>
      tpu.vector_store %arg5[%c0_11, %c0_12], %12 {strides = array<i32>} : memref<32x2xf32, #tpu.memory_space<vmem>>, vector<32x2xf32>,
    } else {
    }
    %c0 = arith.constant 0 : index
    %c0_1 = arith.constant 0 : index
    %3 = vector.load %arg5[%c0, %c0_1] : memref<32x2xf32, #tpu.memory_space<vmem>>, vector<32x2xf32>
    %c0_2 = arith.constant 0 : index
    %c0_3 = arith.constant 0 : index
    %4 = vector.load %arg3[%c0_2, %c0_3] : memref<32x32xf32, #tpu.memory_space<vmem>>, vector<32x32xf32>
    %c0_4 = arith.constant 0 : index
    %c0_5 = arith.constant 0 : index
    %5 = vector.load %arg2[%c0_4, %c0_5] : memref<2x32xf32, #tpu.memory_space<vmem>>, vector<2x32xf32>
    %cst = arith.constant dense<0.000000e+00> : vector<32x2xf32>
    %6 = tpu.matmul %4, %5, %cst {dimension_numbers = #tpu.dot_dimension_numbers<[1], [1], [0], [0], [0, 0, 1, 0], [], []>} : vector<32x32xf32>, vector<2x32xf32>, vector<32x2xf32> -> vector<32x2xf32>
    %7 = arith.addf %3, %6 : vector<32x2xf32>
    %c0_6 = arith.constant 0 : index
    %c0_7 = arith.constant 0 : index
    %8 = vector.load %arg5[%c0_6, %c0_7] : memref<32x2xf32, #tpu.memory_space<vmem>>, vector<32x2xf32>
    tpu.vector_store %arg5[%c0_6, %c0_7], %7 {strides = array<i32>} : memref<32x2xf32, #tpu.memory_space<vmem>>, vector<32x2xf32>,
    %c0_i32_8 = arith.constant 0 : i32
    %9 = arith.cmpi eq, %arg1, %c0_i32_8 : i32
    %10 = arith.extui %9 : i1 to i32
    %c0_i32_9 = arith.constant 0 : i32
    %11 = arith.cmpi ne, %10, %c0_i32_9 : i32
    scf.if %11 {
      %c0_10 = arith.constant 0 : index
      %c0_11 = arith.constant 0 : index
      %12 = vector.load %arg5[%c0_10, %c0_11] : memref<32x2xf32, #tpu.memory_space<vmem>>, vector<32x2xf32>
      %c0_12 = arith.constant 0 : index
      %c0_13 = arith.constant 0 : index
      %13 = vector.load %arg4[%c0_12, %c0_13] : memref<32x2xf32, #tpu.memory_space<vmem>>, vector<32x2xf32>
      tpu.vector_store %arg4[%c0_12, %c0_13], %12 {strides = array<i32>} : memref<32x2xf32, #tpu.memory_space<vmem>>, vector<32x2xf32>,
    } else {
    }
    return
  }
  func.func @transform_0(%arg0: i32, %arg1: i32) -> (i32, i32) {
    %c0_i32 = arith.constant 0 : i32
    %c0_i32_0 = arith.constant 0 : i32
    return %c0_i32, %arg1 : i32, i32
  }
  func.func @transform_1(%arg0: i32, %arg1: i32) -> (i32, i32) {
    %c0_i32 = arith.constant 0 : i32
    return %arg0, %arg1 : i32, i32
  }
  func.func @transform_2(%arg0: i32, %arg1: i32) -> (i32, i32) {
    %c0_i32 = arith.constant 0 : i32
    %c0_i32_0 = arith.constant 0 : i32
    return %arg0, %c0_i32 : i32, i32
  }
}

</mosaic_0001>

<llo_original>
// kernel: tpu_custom_call.1
$region0: #{tpu_custom_call.1}
  #allocation0 [shape = 'u32[]', space=smem, size = 0x4, offset = 0x4, fixed_abs, tag = 'smem constant byte address 0x4 - core index']
  #allocation1 [shape = 'u32[144,128]{1,0:T(1,128)}', space=vmem, size = 0x12000, scoped, tag = 'internal scratch']
  #allocation2 [shape = 'f32[32,2]{1,0:T(8,128)}', space=vmem, size = 0x4000, scoped, tag = 'scratch operand']
  %s0 = inlined_call_operand.hbm [shape: f32[2,32], index: 0, kind: input, shape index: {}]
  %s1 = inlined_call_operand.hbm [shape: f32[32,32], index: 1, kind: input, shape index: {}]
  %s2 = inlined_call_operand.vmem [shape: f32[32,2], index: 2, kind: output, shape index: {}]
  %s3 = sld [smem:[#allocation0]]
  $region34: #{tpu_custom_call.1} parent=0
    _
  %s5 = ssub.s32 1, %s3
  %s6 = scalar_select 0, %s5, %s3
  $region1: #{tpu_custom_call.1} parent=0
    #allocation3 [shape = 'u8[1024]{0}', space=vmem, size = 0x400, scoped, tag = 'input window, operand 0, single buffered']
    #allocation4 [shape = 's32[1]{0}', space=sflag, size = 0x4, scoped, tag = 'scoped memory for tpu_custom_call.1']
    #allocation5 [shape = 'u8[16384]{0}', space=vmem, size = 0x4000, scoped, tag = 'input window, operand 1, single buffered']
    #allocation6 [shape = 's32[1]{0}', space=sflag, size = 0x4, scoped, tag = 'scoped memory for tpu_custom_call.1']
    %7 = vsyncpa [#allocation4], 0
    %8 = vsyncpa [#allocation6], 0
    // Predicated region
    $region2: #{tpu_custom_call.1} parent=1 // pred_check
      _
    $region3: #{tpu_custom_call.1} parent=1 // pred_check_branch
      %10 = sbr.rel (0) target = $region5
    $region4: #{tpu_custom_call.1} parent=1 // pred_region
      %s12 = ssub.s32 32, 32
      %13 = vsyncadd [#allocation4], %s12
      %s15 = sshll.u32 [#allocation3], 4
      %s16 = int_to_ptr.vmem [resolvable:$true] %s15
      %18 = dma.hbm_to_vmem [thread:$0]  %s0, 32, %s16, [#allocation4]
    $region5: #{tpu_custom_call.1} parent=1 // pred_fallthru
      _
    // Predicated region
    $region6: #{tpu_custom_call.1} parent=1 // pred_check
      _
    $region7: #{tpu_custom_call.1} parent=1 // pred_check_branch
      %20 = sbr.rel (0) target = $region9
    $region8: #{tpu_custom_call.1} parent=1 // pred_region
      %s22 = ssub.s32 512, 512
      %23 = vsyncadd [#allocation6], %s22
      %s24 = sshll.u32 [#allocation5], 4
      %s25 = int_to_ptr.vmem [resolvable:$true] %s24
      %30 = dma.hbm_to_vmem [thread:$0]  %s1, 512, %s25, [#allocation6], 128, 128, 8
    $region9: #{tpu_custom_call.1} parent=1 // pred_fallthru
      _
    // Predicated region
    $region10: #{tpu_custom_call.1} parent=1 // pred_check
      _
    $region11: #{tpu_custom_call.1} parent=1 // pred_check_branch
      %32 = sbr.rel (0) target = $region13
    $region12: #{tpu_custom_call.1} parent=1 // pred_region
      %33 = dma.done [#allocation4], 32
    $region13: #{tpu_custom_call.1} parent=1 // pred_fallthru
      _
    // Predicated region
    $region14: #{tpu_custom_call.1} parent=1 // pred_check
      _
    $region15: #{tpu_custom_call.1} parent=1 // pred_check_branch
      %35 = sbr.rel (0) target = $region17
    $region16: #{tpu_custom_call.1} parent=1 // pred_region
      %36 = dma.done [#allocation6], 512
    $region17: #{tpu_custom_call.1} parent=1 // pred_fallthru
      _
    %p37 = scmp.eq.s32.totalorder 0, 0
    // Predicated region
    $region18: #{tpu_custom_call.1} parent=1 // pred_check
      %p38 = pneg %p37
    $region19: #{tpu_custom_call.1} parent=1 // pred_check_branch
      %40 = sbr.rel (%p38) target = $region21
    $region20: #{tpu_custom_call.1} parent=1 // pred_region
      %vm41 = vcmask 15360
      %42 = vst.msk [vmem:[#allocation2] sm:$0xff] %vm41, 0.0
      %43 = vst.msk [vmem:[#allocation2 + $0x8] sm:$0xff] %vm41, 0.0
      %44 = vst.msk [vmem:[#allocation2 + $0x10] sm:$0xff] %vm41, 0.0
      %45 = vst.msk [vmem:[#allocation2 + $0x18] sm:$0xff] %vm41, 0.0
    $region21: #{tpu_custom_call.1} parent=1 // pred_fallthru
      _
    %v46 = vld [vmem:[#allocation2] sm:$0xff]
    %v47 = vld [vmem:[#allocation2 + $0x8] sm:$0xff]
    %v48 = vld [vmem:[#allocation2 + $0x10] sm:$0xff]
    %v49 = vld [vmem:[#allocation2 + $0x18] sm:$0xff]
    %v50 = vld [vmem:[#allocation5] sm:$0xff]
    %v51 = vld [vmem:[#allocation5 + $0x8] sm:$0xff]
    %v52 = vld [vmem:[#allocation5 + $0x10] sm:$0xff]
    %v53 = vld [vmem:[#allocation5 + $0x18] sm:$0xff]
    %v54 = vld [vmem:[#allocation3] sm:$0x3]
    %vm55 = vcmask 261120
    %v57 = vsel %vm55, %v50, 0
    %v60 = vsel %vm55, %v51, 0
    %v63 = vsel %vm55, %v52, 0
    %v66 = vsel %vm55, %v53, 0
    %v69 = vsel %vm55, %v54, 0
    %71 = vmatprep.subr.mxu0 0.0
    %72 = vmatpush1.xpose.msra.mxu0 %v69
    %73 = vmatprep.subr.mxu0 0.0
    %74 = vmatpush1.xpose.msra.mxu0 0.0
    %75 = vmatprep.subr.mxu0 0.0
    %76 = vmatpush1.xpose.msra.mxu0 0.0
    %77 = vmatprep.subr.mxu0 0.0
    %78 = vmatpush1.xpose.msra.mxu0 0.0
    %79 = vmatprep.subr.mxu0 0.0
    %80 = vmatpush1.xpose.msra.mxu0 0.0
    %81 = vmatprep.subr.mxu0 0.0
    %82 = vmatpush1.xpose.msra.mxu0 0.0
    %83 = vmatprep.subr.mxu0 0.0
    %84 = vmatpush1.xpose.msra.mxu0 0.0
    %85 = vmatprep.subr.mxu0 0.0
    %86 = vmatpush1.xpose.msra.mxu0 0.0
    %87 = vmatprep.subr.mxu0 0.0
    %88 = vmatpush1.xpose.msra.mxu0 0.0
    %89 = vmatprep.subr.mxu0 0.0
    %90 = vmatpush1.xpose.msra.mxu0 0.0
    %91 = vmatprep.subr.mxu0 0.0
    %92 = vmatpush1.xpose.msra.mxu0 0.0
    %93 = vmatprep.subr.mxu0 0.0
    %94 = vmatpush1.xpose.msra.mxu0 0.0
    %95 = vmatprep.subr.mxu0 0.0
    %96 = vmatpush1.xpose.msra.mxu0 0.0
    %97 = vmatprep.subr.mxu0 0.0
    %98 = vmatpush1.xpose.msra.mxu0 0.0
    %99 = vmatprep.subr.mxu0 0.0
    %100 = vmatpush1.xpose.msra.mxu0 0.0
    %101 = vmatprep.subr.mxu0 0.0
    %102 = vmatpush1.xpose.msra.mxu0 0.0
    %103 = vmatprep.subr.mxu0 0.0
    %104 = vmatpush1.xpose.msra.mxu0 0.0
    %105 = vmatprep.subr.mxu0 0.0
    %106 = vmatpush1.xpose.msra.mxu0 0.0
    %107 = vmatprep.subr.mxu0 0.0
    %108 = vmatpush1.xpose.msra.mxu0 0.0
    %109 = vmatprep.subr.mxu0 0.0
    %110 = vmatpush1.xpose.msra.mxu0 0.0
    %111 = vmatprep.subr.mxu0 0.0
    %112 = vmatpush1.xpose.msra.mxu0 0.0
    %113 = vmatprep.subr.mxu0 0.0
    %114 = vmatpush1.xpose.msra.mxu0 0.0
    %115 = vmatprep.subr.mxu0 0.0
    %116 = vmatpush1.xpose.msra.mxu0 0.0
    %117 = vmatprep.subr.mxu0 0.0
    %118 = vmatpush1.xpose.msra.mxu0 0.0
    %119 = vmatprep.subr.mxu0 0.0
    %120 = vmatpush1.xpose.msra.mxu0 0.0
    %121 = vmatprep.subr.mxu0 0.0
    %122 = vmatpush1.xpose.msra.mxu0 0.0
    %123 = vmatprep.subr.mxu0 0.0
    %124 = vmatpush1.xpose.msra.mxu0 0.0
    %125 = vmatprep.subr.mxu0 0.0
    %126 = vmatpush1.xpose.msra.mxu0 0.0
    %127 = vmatprep.subr.mxu0 0.0
    %128 = vmatpush1.xpose.msra.mxu0 0.0
    %129 = vmatprep.subr.mxu0 0.0
    %130 = vmatpush1.xpose.msra.mxu0 0.0
    %131 = vmatprep.subr.mxu0 0.0
    %132 = vmatpush1.xpose.msra.mxu0 0.0
    %133 = vmatprep.subr.mxu0 0.0
    %134 = vmatpush1.xpose.msra.mxu0 0.0
    %135 = vmatprep.mubr.f32.mxu0 0.0
    %136 = vmatmul.mubr.f32.gmra.mrb[0].mxu0 %v57
    %v137 = vpop.f32.mrb[0].mxu0
    %v138 = vadd.f32 0.0, %v137
    %v139 = vpop.f32.mrb[0].mxu0
    %140 = vmatprep.mubr.f32.mxu0 0.0
    %141 = vmatmul.mubr.f32.gmra.mrb[0].mxu0 %v60
    %v142 = vpop.f32.mrb[0].mxu0
    %v143 = vadd.f32 0.0, %v142
    %v144 = vpop.f32.mrb[0].mxu0
    %145 = vmatprep.mubr.f32.mxu0 0.0
    %146 = vmatmul.mubr.f32.gmra.mrb[0].mxu0 %v63
    %v147 = vpop.f32.mrb[0].mxu0
    %v148 = vadd.f32 0.0, %v147
    %v149 = vpop.f32.mrb[0].mxu0
    %150 = vmatprep.mubr.f32.mxu0 0.0
    %151 = vmatmul.mubr.f32.gmra.mrb[0].mxu0 %v66
    %v152 = vpop.f32.mrb[0].mxu0
    %v153 = vadd.f32 0.0, %v152
    %v154 = vpop.f32.mrb[0].mxu0
    %155 = vdwg.mxu0
    %v156 = vadd.f32 %v46, %v138
    %v157 = vadd.f32 %v47, %v143
    %v158 = vadd.f32 %v48, %v148
    %v159 = vadd.f32 %v49, %v153
    %vm160 = vcmask 15360
    %161 = vst.msk [vmem:[#allocation2] sm:$0xff] %vm160, %v156
    %162 = vst.msk [vmem:[#allocation2 + $0x8] sm:$0xff] %vm160, %v157
    %163 = vst.msk [vmem:[#allocation2 + $0x10] sm:$0xff] %vm160, %v158
    %164 = vst.msk [vmem:[#allocation2 + $0x18] sm:$0xff] %vm160, %v159
    // Predicated region
    $region22: #{tpu_custom_call.1} parent=1 // pred_check
      %p165 = pneg %p37
    $region23: #{tpu_custom_call.1} parent=1 // pred_check_branch
      %167 = sbr.rel (%p165) target = $region25
    $region24: #{tpu_custom_call.1} parent=1 // pred_region
      %v168 = vld [vmem:[#allocation2] sm:$0xff]
      %v169 = vld [vmem:[#allocation2 + $0x8] sm:$0xff]
      %v170 = vld [vmem:[#allocation2 + $0x10] sm:$0xff]
      %v171 = vld [vmem:[#allocation2 + $0x18] sm:$0xff]
      %172 = vst.msk [vmem:[%s2] sm:$0xff] %vm160, %v168
      %173 = vst.msk [vmem:[%s2 + $0x8] sm:$0xff] %vm160, %v169
      %174 = vst.msk [vmem:[%s2 + $0x10] sm:$0xff] %vm160, %v170
      %175 = vst.msk [vmem:[%s2 + $0x18] sm:$0xff] %vm160, %v171
    $region25: #{tpu_custom_call.1} parent=1 // pred_fallthru
      _
    // Predicated region
    $region26: #{tpu_custom_call.1} parent=1 // pred_check
      _
    $region27: #{tpu_custom_call.1} parent=1 // pred_check_branch
      %177 = sbr.rel (0) target = $region29
    $region28: #{tpu_custom_call.1} parent=1 // pred_region
      _
    $region29: #{tpu_custom_call.1} parent=1 // pred_fallthru
      _
    // Predicated region
    $region30: #{tpu_custom_call.1} parent=1 // pred_check
      _
    $region31: #{tpu_custom_call.1} parent=1 // pred_check_branch
      %179 = sbr.rel (0) target = $region33
    $region32: #{tpu_custom_call.1} parent=1 // pred_region
      _
    $region33: #{tpu_custom_call.1} parent=1 // pred_fallthru
      _
    %180 = vsyncpa [#allocation4], 1
    %181 = vsyncpa [#allocation6], 1

</llo_original>
